<compile_context>
chip_gen: v6e
topology: v6e:2x2x1
jax: 0.10.0
libtpu: 0.0.40
codegen_flags: <defaults>
</compile_context>

<pallas_src>
import jax
import jax.numpy as jnp
from jax.experimental import pallas as pl
from jax.experimental.pallas import tpu as pltpu

F_IN = 10
F_OUT = 1
LANE = 128
ROW_ALIGN = 8               # sublane granularity for the batch (second-to-last) dim
SMALL_B_FASTPATH = 4096     # below this, plain XLA beats any pallas_call
MIN_ROWS_TO_SPLIT = 2048    # single-tile batches above this are split into 2 grid steps

# Worst-case VMEM bytes per batch row per pipeline stage:
#   x   block [tb, 10] f32 lane-pads to [tb, 128] -> 512 B/row
#   out block [tb, 1]  f32 lane-pads to [tb, 128] -> 512 B/row
# and the pipeline double-buffers both -> 2 * (512 + 512) B/row.
_VMEM_BYTES_PER_ROW = 2 * 2 * LANE * 4


def _round_up(n, m):
    return ((n + m - 1) // m) * m


def _vmem_budget_bytes():
    # Per-generation budget: ~1/3 of physical VMEM, capped.  v5e/v6e (128 MiB)
    # land at 40 MiB; v7x (64 MiB physical) lands at ~21 MiB.
    try:
        cap = pltpu.get_tpu_info().vmem_capacity_bytes
    except Exception:
        cap = 64 << 20   # conservative (v7x-sized) fallback
    return min(cap // 3, 40 << 20)


def _pick_batch_tile(batch, vmem_budget):
    tb_cap = max(
        ROW_ALIGN,
        (vmem_budget // _VMEM_BYTES_PER_ROW) // ROW_ALIGN * ROW_ALIGN,
    )
    rows = _round_up(max(batch, 1), ROW_ALIGN)
    if rows > tb_cap:
        return tb_cap
    if rows >= MIN_ROWS_TO_SPLIT:
        # Whole batch fits in one tile: use two tiles so both v7x TensorCores
        # get a grid step and DMA/compute pipelining still engages.
        return _round_up(pl.cdiv(rows, 2), ROW_ALIGN)
    return rows


def linear_kernel(x_ref, w_ref, b_ref, o_ref):
    # x_ref: [tb, F_IN]  VMEM block of input rows (natural layout, no transpose)
    # w_ref: [1,  F_IN]  VMEM f32 weight row (same block every grid step)
    # b_ref: [F_OUT]     SMEM f32 bias scalar
    # o_ref: [tb, F_OUT] VMEM output block
    x = x_ref[...].astype(jnp.float32)            # f32 accumulate even for bf16/fp8 inputs
    prod = x * w_ref[...]                         # VPU broadcast multiply   [tb, F_IN]
    acc = jnp.sum(prod, axis=1, keepdims=True)    # XLU cross-lane reduce -> [tb, 1]
    o_ref[...] = (acc + b_ref[0]).astype(o_ref.dtype)


def simple_net_forward(x, weight, bias, *, use_pallas=None):
    """SimpleNet forward: x @ weight.T + bias.

    x: [B, 10]; weight: [1, 10] (PyTorch nn.Linear layout); bias: [1] -> [B, 1].
    """
    B, f_in = x.shape
    f_out = weight.shape[0]
    assert f_in == F_IN and f_out == F_OUT

    if use_pallas is None:
        use_pallas = B >= SMALL_B_FASTPATH
    if not use_pallas:
        # Small-batch fast path: a pallas_call is pure fixed overhead here.
        y = x.astype(jnp.float32) @ weight.astype(jnp.float32).T + bias.astype(jnp.float32)
        return y.astype(x.dtype)

    vmem_budget = _vmem_budget_bytes()
    tb = _pick_batch_tile(B, vmem_budget)
    assert tb % ROW_ALIGN == 0, "batch tile must stay a multiple of the 8-sublane granule"
    grid_b = pl.cdiv(B, tb)   # partial last block is clamped/masked by Pallas

    w_row = weight.astype(jnp.float32).reshape(F_OUT, F_IN)   # [1, 10] f32
    b_smem = bias.astype(jnp.float32).reshape(F_OUT)          # [1] scalar for SMEM

    out = pl.pallas_call(
        linear_kernel,
        out_shape=jax.ShapeDtypeStruct((B, F_OUT), x.dtype),
        grid_spec=pltpu.PrefetchScalarGridSpec(
            num_scalar_prefetch=0,
            grid=(grid_b,),
            in_specs=[
                pl.BlockSpec((tb, F_IN), lambda i: (i, 0)),     # batch tile of x
                pl.BlockSpec((F_OUT, F_IN), lambda i: (0, 0)),  # weight row, constant
                pl.BlockSpec(memory_space=pltpu.SMEM),          # bias scalar in SMEM
            ],
            out_specs=pl.BlockSpec((tb, F_OUT), lambda i: (i, 0)),
        ),
        compiler_params=pltpu.CompilerParams(
            dimension_semantics=("parallel",),                  # batch is embarrassingly parallel
            vmem_limit_bytes=min(48 << 20, vmem_budget + (8 << 20)),
        ),
    )(x, w_row, b_smem)
    return out


if __name__ == "__main__":
    key = jax.random.PRNGKey(0)
    k_x, k_w, k_b, k_x2 = jax.random.split(key, 4)

    # Deterministic init matching nn.Linear's U(-1/sqrt(fan_in), +1/sqrt(fan_in)).
    bound = 1.0 / (F_IN ** 0.5)
    weight = jax.random.uniform(k_w, (F_OUT, F_IN), jnp.float32, -bound, bound)
    bias = jax.random.uniform(k_b, (F_OUT,), jnp.float32, -bound, bound)

    # Spec-sized case (batch=8); force the Pallas path so the kernel itself is
    # exercised (the auto heuristic would pick the XLA fast path here).
    B = 8
    x = jax.random.normal(k_x, (B, F_IN), jnp.float32)
    out = jax.block_until_ready(simple_net_forward(x, weight, bias, use_pallas=True))
    ref = x @ weight.T + bias
    assert out.shape == (B, F_OUT)
    assert jnp.allclose(out, ref, atol=1e-5, rtol=1e-5)

    # Multi-tile case: exercises the >=2-step "parallel" grid (tb=1024, grid=2).
    B2 = 2048
    x2 = jax.random.normal(k_x2, (B2, F_IN), jnp.float32)
    out2 = jax.block_until_ready(simple_net_forward(x2, weight, bias, use_pallas=True))
    ref2 = x2 @ weight.T + bias
    assert out2.shape == (B2, F_OUT)
    assert jnp.allclose(out2, ref2, atol=1e-5, rtol=1e-5)

    # Auto heuristic: tiny batches take the plain-XLA fast path.
    out_fast = jax.block_until_ready(simple_net_forward(x, weight, bias))
    assert jnp.allclose(out_fast, ref, atol=1e-5, rtol=1e-5)

    print("KERNEL_OK")
</pallas_src>

<mosaic_0001>
module attributes {stable_mosaic.version = 11 : i64} {
  func.func @linear_kernel(%arg0: i32, %arg1: memref<8x10xf32, #tpu.memory_space<vmem>>, %arg2: memref<1x10xf32, #tpu.memory_space<vmem>>, %arg3: memref<1xf32, #tpu.memory_space<smem>>, %arg4: memref<8x1xf32, #tpu.memory_space<vmem>>) attributes {dimension_semantics = [#tpu.dimension_semantics<parallel>], iteration_bounds = array<i64: 1>, scalar_prefetch = 0 : i64, scratch_operands = 0 : i64, tpu.core_type = #tpu.core_type<tc>, window_params = [{transform_indices = @transform_0, window_bounds = array<i64: 8, 10>}, {pipeline_mode = #tpu.pipeline_mode<synchronous>, transform_indices = @transform_1, window_bounds = array<i64: 1, 10>}, {transform_indices = @transform_2, window_bounds = array<i64: 1>}, {transform_indices = @transform_3, window_bounds = array<i64: 8, 1>}]} {
    %c0 = arith.constant 0 : index
    %c0_0 = arith.constant 0 : index
    %0 = vector.load %arg1[%c0, %c0_0] : memref<8x10xf32, #tpu.memory_space<vmem>>, vector<8x10xf32>
    %c0_1 = arith.constant 0 : index
    %c0_2 = arith.constant 0 : index
    %1 = vector.load %arg2[%c0_1, %c0_2] : memref<1x10xf32, #tpu.memory_space<vmem>>, vector<1x10xf32>
    %2 = vector.broadcast %1 : vector<1x10xf32> to vector<8x10xf32>
    %3 = arith.mulf %0, %2 : vector<8x10xf32>
    %cst = arith.constant dense<0.000000e+00> : vector<8xf32>
    %4 = vector.multi_reduction <add>, %3, %cst [1] : vector<8x10xf32> to vector<8xf32>
    %5 = vector.shape_cast %4 : vector<8xf32> to vector<8x1xf32>
    %c0_3 = arith.constant 0 : index
    %6 = memref.load %arg3[%c0_3] : memref<1xf32, #tpu.memory_space<smem>>
    %7 = vector.broadcast %6 : f32 to vector<8x1xf32>
    %8 = arith.addf %5, %7 : vector<8x1xf32>
    %c0_4 = arith.constant 0 : index
    %c0_5 = arith.constant 0 : index
    %9 = vector.load %arg4[%c0_4, %c0_5] : memref<8x1xf32, #tpu.memory_space<vmem>>, vector<8x1xf32>
    tpu.vector_store %arg4[%c0_4, %c0_5], %8 {strides = array<i32>} : memref<8x1xf32, #tpu.memory_space<vmem>>, vector<8x1xf32>,
    return
  }
  func.func @transform_0(%arg0: i32) -> (i32, i32) {
    %c0_i32 = arith.constant 0 : i32
    %c0_i32_0 = arith.constant 0 : i32
    return %arg0, %c0_i32 : i32, i32
  }
  func.func @transform_1(%arg0: i32) -> (i32, i32) {
    %c0_i32 = arith.constant 0 : i32
    %c0_i32_0 = arith.constant 0 : i32
    %c0_i32_1 = arith.constant 0 : i32
    return %c0_i32, %c0_i32_0 : i32, i32
  }
  func.func @transform_2(%arg0: i32) -> i32 {
    %c0_i32 = arith.constant 0 : i32
    %c0_i32_0 = arith.constant 0 : i32
    return %c0_i32 : i32
  }
  func.func @transform_3(%arg0: i32) -> (i32, i32) {
    %c0_i32 = arith.constant 0 : i32
    %c0_i32_0 = arith.constant 0 : i32
    return %arg0, %c0_i32 : i32, i32
  }
}

</mosaic_0001>

<llo_original>
// kernel: tpu_custom_call.1
$region0: #{tpu_custom_call.1}
  #allocation0 [shape = 'u32[]', space=smem, size = 0x4, offset = 0x4, fixed_abs, tag = 'smem constant byte address 0x4 - core index']
  #allocation1 [shape = 'u32[144,128]{1,0:T(1,128)}', space=vmem, size = 0x12000, scoped, tag = 'internal scratch']
  #allocation2 [shape = 'f32[1]{0:T(128)S(6)}', space=smem, size = 0x200, scoped, tag = 'scoped memory for tpu_custom_call.1']
  %s0 = inlined_call_operand.hbm [shape: f32[8,10], index: 0, kind: input, shape index: {}]
  %s1 = inlined_call_operand.vmem [shape: f32[1,10], index: 1, kind: input, shape index: {}]
  %s2 = inlined_call_operand.<no memory space> [shape: f32[1], index: 2, kind: input, shape index: {}]
  %s3 = inlined_call_operand.vmem [shape: f32[8,1], index: 3, kind: output, shape index: {}]
  %s4 = sld [smem:[#allocation0]]
  $region26: #{tpu_custom_call.1} parent=0
    _
  %s6 = ssub.s32 1, %s4
  %s7 = scalar_select 0, %s6, %s4
  %8 = sst [smem:[#allocation2]] %s2
  $region1: #{tpu_custom_call.1} parent=0
    #allocation3 [shape = 'u8[4096]{0}', space=vmem, size = 0x1000, scoped, tag = 'input window, operand 0, single buffered']
    #allocation4 [shape = 's32[1]{0}', space=sflag, size = 0x4, scoped, tag = 'scoped memory for tpu_custom_call.1']
    %9 = vsyncpa [#allocation4], 0
    // Predicated region
    $region2: #{tpu_custom_call.1} parent=1 // pred_check
      _
    $region3: #{tpu_custom_call.1} parent=1 // pred_check_branch
      %11 = sbr.rel (0) target = $region5
    $region4: #{tpu_custom_call.1} parent=1 // pred_region
      %s13 = ssub.s32 128, 128
      %14 = vsyncadd [#allocation4], %s13
      %s16 = sshll.u32 [#allocation3], 4
      %s17 = int_to_ptr.vmem [resolvable:$true] %s16
      %19 = dma.hbm_to_vmem [thread:$0]  %s0, 128, %s17, [#allocation4]
    $region5: #{tpu_custom_call.1} parent=1 // pred_fallthru
      _
    // Predicated region
    $region6: #{tpu_custom_call.1} parent=1 // pred_check
      _
    $region7: #{tpu_custom_call.1} parent=1 // pred_check_branch
      %21 = sbr.rel (0) target = $region9
    $region8: #{tpu_custom_call.1} parent=1 // pred_region
      _
    $region9: #{tpu_custom_call.1} parent=1 // pred_fallthru
      _
    // Predicated region
    $region10: #{tpu_custom_call.1} parent=1 // pred_check
      _
    $region11: #{tpu_custom_call.1} parent=1 // pred_check_branch
      %23 = sbr.rel (0) target = $region13
    $region12: #{tpu_custom_call.1} parent=1 // pred_region
      _
    $region13: #{tpu_custom_call.1} parent=1 // pred_fallthru
      _
    // Predicated region
    $region14: #{tpu_custom_call.1} parent=1 // pred_check
      _
    $region15: #{tpu_custom_call.1} parent=1 // pred_check_branch
      %25 = sbr.rel (0) target = $region17
    $region16: #{tpu_custom_call.1} parent=1 // pred_region
      %26 = dma.done [#allocation4], 128
    $region17: #{tpu_custom_call.1} parent=1 // pred_fallthru
      _
    %v27 = vld [vmem:[#allocation3] sm:$0xff]
    %v28 = vld [vmem:[%s1] sm:$0x1]
    %v30 = vlaneseq
    %v31 = vshrl.u32 %v30, 7
    %v32 = vsub.s32 0, %v31
    %v33 = vrot.slane %v28, %v32
    %v35 = vmul.f32 %v27, %v33
    %vm36 = vcmask 80896
    %v37 = vsel %vm36, %v35, 0.0
    %38 = vadd.xlane.f32.xlu0 %v37
    %v39 = vpop.xlane.xlu0 %38
    %s40 = sld [smem:[#allocation2]]
    %v41 = vstv %s40
    %v42 = vadd.f32 %v39, %v41
    %vm43 = vcmask 7168
    %44 = vst.msk [vmem:[%s3] sm:$0xff] %vm43, %v42
    // Predicated region
    $region18: #{tpu_custom_call.1} parent=1 // pred_check
      _
    $region19: #{tpu_custom_call.1} parent=1 // pred_check_branch
      %46 = sbr.rel (0) target = $region21
    $region20: #{tpu_custom_call.1} parent=1 // pred_region
      _
    $region21: #{tpu_custom_call.1} parent=1 // pred_fallthru
      _
    // Predicated region
    $region22: #{tpu_custom_call.1} parent=1 // pred_check
      _
    $region23: #{tpu_custom_call.1} parent=1 // pred_check_branch
      %48 = sbr.rel (0) target = $region25
    $region24: #{tpu_custom_call.1} parent=1 // pred_region
      _
    $region25: #{tpu_custom_call.1} parent=1 // pred_fallthru
      _
    %49 = vsyncpa [#allocation4], 1

</llo_original>
